<compile_context>
chip_gen: v7x
topology: tpu7x:2x2x1
jax: 0.10.0
libtpu: 0.0.40
codegen_flags: <defaults>
</compile_context>

<pallas_src>
import functools

import numpy as np
import jax
import jax.numpy as jnp
from jax.experimental import pallas as pl
from jax.experimental.pallas import tpu as pltpu

EPS = 1e-5


# ------------------------------ Pallas kernel -------------------------------

def _fused_block_kernel(x_ref, w1_ref, b1_ref, w2_ref, b2_ref, ws_ref, bs_ref,
                        out_ref, pad1_ref, *, stride):
    """One full BasicBlock for one image.

    x_ref   : (Hp, Wp*Cin)            f32  zero-padded input, (W, C) flattened
    w1_ref  : (3, Wp*Cin, OW*Cout)    bf16 conv1 row-matrices (BN1 scale folded)
    b1_ref  : (1, OW*Cout)            f32  BN1 bias (conv bias folded in)
    w2_ref  : (3, OW*Cout, OW*Cout)   bf16 conv2 row-matrices (BN2 scale folded)
    b2_ref  : (1, OW*Cout)            f32
    ws_ref  : (Wp*Cin, OW*Cout)       bf16 shortcut row-matrix (1x1 conv + BN,
                                           or an identity placement)
    bs_ref  : (1, OW*Cout)            f32
    out_ref : (OH, OW*Cout)           f32
    pad1_ref: (OH+2, OW*Cout)         f32  VMEM scratch (H-padded conv1 output)
    """
    OH, NL = out_ref.shape

    def in_rows(ky):
        # padded input row for output row oh, tap ky:  stride*oh + ky
        if stride == 1:
            return x_ref[pl.ds(ky, OH), :]
        return x_ref[pl.ds(ky, OH, stride=stride), :]

    # ---- conv1 (3x3, pad 1, stride s) + BN1 (scale in w1) + ReLU ----
    acc1 = jnp.zeros((OH, NL), jnp.float32)
    for ky in range(3):
        acc1 += jnp.dot(in_rows(ky).astype(jnp.bfloat16), w1_ref[ky],
                        preferred_element_type=jnp.float32)
    out1 = jnp.maximum(acc1 + b1_ref[...], 0.0)

    # H-pad conv1 output with zeros in VMEM (W padding is folded into w2 mats)
    pad1_ref[...] = jnp.zeros(pad1_ref.shape, pad1_ref.dtype)
    pad1_ref[pl.ds(1, OH), :] = out1

    # ---- conv2 (3x3, pad 1, stride 1) + BN2 (scale in w2) ----
    acc2 = jnp.zeros((OH, NL), jnp.float32)
    for ky in range(3):
        acc2 += jnp.dot(pad1_ref[pl.ds(ky, OH), :].astype(jnp.bfloat16),
                        w2_ref[ky], preferred_element_type=jnp.float32)
    acc2 += b2_ref[...]

    # ---- shortcut (identity placement or 1x1 stride-s conv + BN) ----
    acc2 += jnp.dot(in_rows(1).astype(jnp.bfloat16), ws_ref[...],
                    preferred_element_type=jnp.float32)
    acc2 += bs_ref[...]

    out_ref[...] = jnp.maximum(acc2, 0.0)


# ------------------------------- glue (JAX) ---------------------------------

def _fold_bn(conv_bias, bn):
    # eval-mode BN folded with the conv bias into per-channel (scale, bias)
    scale = bn["gamma"] / jnp.sqrt(bn["var"] + EPS)
    bias = bn["beta"] - bn["mean"] * scale + conv_bias * scale
    return scale, bias


def _conv_row_mats(w_eff, in_width, out_width, stride, col_offset):
    """Per-ky matrices M[ky] of shape (in_width*Cin, out_width*Cout) such that
    M[ky][(stride*ow + kx + col_offset)*Cin + c, ow*Cout + o] = w_eff[o, c, ky, kx].
    Entries whose input column falls outside [0, in_width) are dropped (they
    correspond to zero padding)."""
    Cout, Cin, KH, KW = w_eff.shape
    kx = np.arange(KW)[:, None]
    ow = np.arange(out_width)[None, :]
    j = stride * ow + kx + col_offset                    # (KW, OW) input column
    kxv, owv = np.nonzero((j >= 0) & (j < in_width))
    jv = j[kxv, owv]
    e = len(jv)
    c = np.arange(Cin)
    o = np.arange(Cout)
    rows = np.broadcast_to(jv[:, None, None] * Cin + c[None, :, None],
                           (e, Cin, Cout)).reshape(-1)
    cols = np.broadcast_to(owv[:, None, None] * Cout + o[None, None, :],
                           (e, Cin, Cout)).reshape(-1)
    mats = []
    for ky in range(KH):
        vals = jnp.transpose(w_eff[:, :, ky, :], (2, 1, 0))[kxv]   # (e, Cin, Cout)
        m = jnp.zeros((in_width * Cin, out_width * Cout), jnp.float32)
        mats.append(m.at[rows, cols].set(vals.reshape(-1)))
    return jnp.stack(mats)                               # (KH, in*Cin, out*Cout)


def basic_block_forward(x_nhwc, p):
    N, H, W, Cin = x_nhwc.shape
    stride = p["stride"]
    Cout = p["w1"].shape[0]
    OH = (H - 1) // stride + 1
    OW = (W - 1) // stride + 1
    Hp, Wp = H + 2, W + 2
    NL = OW * Cout

    # zero-pad spatially and flatten (W, C) onto the lane axis (~1.3x bytes)
    xp = jnp.pad(x_nhwc, ((0, 0), (1, 1), (1, 1), (0, 0)))
    xp = xp.reshape(N, Hp, Wp * Cin).astype(jnp.float32)

    # fold BN scales into conv weights; only "+bias" remains in the kernel
    s1, bias1 = _fold_bn(p["b1"], p["bn1"])
    s2, bias2 = _fold_bn(p["b2"], p["bn2"])
    w1_mats = _conv_row_mats(p["w1"] * s1[:, None, None, None],
                             Wp, OW, stride, col_offset=0).astype(jnp.bfloat16)
    w2_mats = _conv_row_mats(p["w2"] * s2[:, None, None, None],
                             OW, OW, 1, col_offset=-1).astype(jnp.bfloat16)
    if "ws" in p:            # projection shortcut: 1x1 stride-s conv + BN
        ss, bias_s = _fold_bn(p["bs"], p["bns"])
        ws_eff = p["ws"] * ss[:, None, None, None]
    else:                    # identity shortcut as an identity placement matrix
        ws_eff = jnp.eye(Cout, dtype=jnp.float32)[:, :, None, None]
        bias_s = jnp.zeros((Cout,), jnp.float32)
    ws_mat = _conv_row_mats(ws_eff, Wp, OW, stride,
                            col_offset=1)[0].astype(jnp.bfloat16)

    b1_row = jnp.tile(bias1, OW)[None, :].astype(jnp.float32)
    b2_row = jnp.tile(bias2, OW)[None, :].astype(jnp.float32)
    bs_row = jnp.tile(bias_s, OW)[None, :].astype(jnp.float32)

    def const_spec(shape):
        return pl.BlockSpec(shape, lambda n, _s=len(shape): (0,) * _s)

    out_flat = pl.pallas_call(
        functools.partial(_fused_block_kernel, stride=stride),
        out_shape=jax.ShapeDtypeStruct((N, OH, NL), jnp.float32),
        grid=(N,),
        in_specs=[
            pl.BlockSpec((None, Hp, Wp * Cin), lambda n: (n, 0, 0)),
            const_spec(w1_mats.shape), const_spec(b1_row.shape),
            const_spec(w2_mats.shape), const_spec(b2_row.shape),
            const_spec(ws_mat.shape), const_spec(bs_row.shape),
        ],
        out_specs=pl.BlockSpec((None, OH, NL), lambda n: (n, 0, 0)),
        scratch_shapes=[pltpu.VMEM((OH + 2, NL), jnp.float32)],
        compiler_params=pltpu.CompilerParams(
            dimension_semantics=("parallel",),
            vmem_limit_bytes=32 * 1024 * 1024),
    )(xp, w1_mats, b1_row, w2_mats, b2_row, ws_mat, bs_row)

    return out_flat.reshape(N, OH, OW, Cout)


def resblock_forward(x_nchw, block_params):
    x = jnp.transpose(x_nchw, (0, 2, 3, 1)).astype(jnp.float32)   # NCHW -> NHWC
    for p in block_params:
        x = basic_block_forward(x, p)
    return jnp.transpose(x, (0, 3, 1, 2))                          # NHWC -> NCHW


# ------------------------- deterministic parameters -------------------------

def _init_bn(key, c):
    k1, k2 = jax.random.split(key)
    return {"gamma": 1.0 + 0.1 * jax.random.normal(k1, (c,), jnp.float32),
            "beta": 0.1 * jax.random.normal(k2, (c,), jnp.float32),
            "mean": jnp.zeros((c,), jnp.float32),
            "var": jnp.ones((c,), jnp.float32)}


def _init_basic_block(key, in_c, out_c):
    stride = 2 if in_c != out_c else 1
    ks = jax.random.split(key, 9)
    p = {
        "stride": stride,
        "w1": 0.1 * jax.random.normal(ks[0], (out_c, in_c, 3, 3), jnp.float32),
        "b1": 0.1 * jax.random.normal(ks[1], (out_c,), jnp.float32),
        "bn1": _init_bn(ks[2], out_c),
        "w2": 0.1 * jax.random.normal(ks[3], (out_c, out_c, 3, 3), jnp.float32),
        "b2": 0.1 * jax.random.normal(ks[4], (out_c,), jnp.float32),
        "bn2": _init_bn(ks[5], out_c),
    }
    if in_c != out_c:
        p["ws"] = 0.1 * jax.random.normal(ks[6], (out_c, in_c, 1, 1), jnp.float32)
        p["bs"] = 0.1 * jax.random.normal(ks[7], (out_c,), jnp.float32)
        p["bns"] = _init_bn(ks[8], out_c)
    return p


def init_resblock(key, blocknum, in_channel, out_channel):
    params = []
    for i in range(blocknum):
        key, sub = jax.random.split(key)
        if i == 0 and in_channel != out_channel:
            params.append(_init_basic_block(sub, in_channel, out_channel))
        else:
            params.append(_init_basic_block(sub, out_channel, out_channel))
    return params


# ----------------------------------- main -----------------------------------

if __name__ == "__main__":
    key = jax.random.PRNGKey(0)
    kx, kp = jax.random.split(key)

    # ResBlock(BasicBlock, blocknum=2, in_channel=4, out_channel=8)
    x = jax.random.normal(kx, (2, 4, 16, 16), jnp.float32)   # NCHW, like PyTorch
    params = init_resblock(kp, blocknum=2, in_channel=4, out_channel=8)

    y = resblock_forward(x, params)
    jax.block_until_ready(y)
    assert y.shape == (2, 8, 8, 8), y.shape   # stride-2 first block halves H, W
    print("KERNEL_OK")
</pallas_src>

<mosaic_0001>
module attributes {stable_mosaic.version = 11 : i64} {
  func.func @_fused_block_kernel(%arg0: i32, %arg1: memref<1x18x72xf32, #tpu.memory_space<vmem>>, %arg2: memref<3x72x64xbf16, #tpu.memory_space<vmem>>, %arg3: memref<1x64xf32, #tpu.memory_space<vmem>>, %arg4: memref<3x64x64xbf16, #tpu.memory_space<vmem>>, %arg5: memref<1x64xf32, #tpu.memory_space<vmem>>, %arg6: memref<72x64xbf16, #tpu.memory_space<vmem>>, %arg7: memref<1x64xf32, #tpu.memory_space<vmem>>, %arg8: memref<1x8x64xf32, #tpu.memory_space<vmem>>, %arg9: memref<10x64xf32, #tpu.memory_space<vmem>>) attributes {dimension_semantics = [#tpu.dimension_semantics<parallel>], iteration_bounds = array<i64: 2>, scalar_prefetch = 0 : i64, scratch_operands = 1 : i64, tpu.core_type = #tpu.core_type<tc>, window_params = [{transform_indices = @transform_0, window_bounds = array<i64: 1, 18, 72>}, {pipeline_mode = #tpu.pipeline_mode<synchronous>, transform_indices = @transform_1, window_bounds = array<i64: 3, 72, 64>}, {pipeline_mode = #tpu.pipeline_mode<synchronous>, transform_indices = @transform_2, window_bounds = array<i64: 1, 64>}, {pipeline_mode = #tpu.pipeline_mode<synchronous>, transform_indices = @transform_3, window_bounds = array<i64: 3, 64, 64>}, {pipeline_mode = #tpu.pipeline_mode<synchronous>, transform_indices = @transform_4, window_bounds = array<i64: 1, 64>}, {pipeline_mode = #tpu.pipeline_mode<synchronous>, transform_indices = @transform_5, window_bounds = array<i64: 72, 64>}, {pipeline_mode = #tpu.pipeline_mode<synchronous>, transform_indices = @transform_6, window_bounds = array<i64: 1, 64>}, {transform_indices = @transform_7, window_bounds = array<i64: 1, 8, 64>}]} {
    %cst = arith.constant 0.000000e+00 : f32
    %0 = vector.broadcast %cst : f32 to vector<8x64xf32>
    %c0 = arith.constant 0 : index
    %c0_0 = arith.constant 0 : index
    %c0_1 = arith.constant 0 : index
    %1 = tpu.strided_load %arg1[%c0, %c0_0, %c0_1] {strides = array<i32: 1, 2, 1>} : memref<1x18x72xf32, #tpu.memory_space<vmem>>, vector<1x8x72xf32>
    %2 = vector.shape_cast %1 : vector<1x8x72xf32> to vector<8x72xf32>
    %3 = arith.truncf %2 : vector<8x72xf32> to vector<8x72xbf16>
    %c0_2 = arith.constant 0 : index
    %c0_3 = arith.constant 0 : index
    %c0_4 = arith.constant 0 : index
    %4 = vector.load %arg2[%c0_2, %c0_3, %c0_4] : memref<3x72x64xbf16, #tpu.memory_space<vmem>>, vector<1x72x64xbf16>
    %5 = vector.shape_cast %4 : vector<1x72x64xbf16> to vector<72x64xbf16>
    %cst_5 = arith.constant dense<0.000000e+00> : vector<8x64xf32>
    %6 = tpu.matmul %3, %5, %cst_5 {dimension_numbers = #tpu.dot_dimension_numbers<[1], [0], [0], [1], [0, 0, 1, 1], [], []>} : vector<8x72xbf16>, vector<72x64xbf16>, vector<8x64xf32> -> vector<8x64xf32>
    %7 = arith.addf %0, %6 : vector<8x64xf32>
    %c0_6 = arith.constant 0 : index
    %c1 = arith.constant 1 : index
    %c0_7 = arith.constant 0 : index
    %8 = tpu.strided_load %arg1[%c0_6, %c1, %c0_7] {strides = array<i32: 1, 2, 1>} : memref<1x18x72xf32, #tpu.memory_space<vmem>>, vector<1x8x72xf32>
    %9 = vector.shape_cast %8 : vector<1x8x72xf32> to vector<8x72xf32>
    %10 = arith.truncf %9 : vector<8x72xf32> to vector<8x72xbf16>
    %c1_8 = arith.constant 1 : index
    %c0_9 = arith.constant 0 : index
    %c0_10 = arith.constant 0 : index
    %11 = vector.load %arg2[%c1_8, %c0_9, %c0_10] : memref<3x72x64xbf16, #tpu.memory_space<vmem>>, vector<1x72x64xbf16>
    %12 = vector.shape_cast %11 : vector<1x72x64xbf16> to vector<72x64xbf16>
    %cst_11 = arith.constant dense<0.000000e+00> : vector<8x64xf32>
    %13 = tpu.matmul %10, %12, %cst_11 {dimension_numbers = #tpu.dot_dimension_numbers<[1], [0], [0], [1], [0, 0, 1, 1], [], []>} : vector<8x72xbf16>, vector<72x64xbf16>, vector<8x64xf32> -> vector<8x64xf32>
    %14 = arith.addf %7, %13 : vector<8x64xf32>
    %c0_12 = arith.constant 0 : index
    %c2 = arith.constant 2 : index
    %c0_13 = arith.constant 0 : index
    %15 = tpu.strided_load %arg1[%c0_12, %c2, %c0_13] {strides = array<i32: 1, 2, 1>} : memref<1x18x72xf32, #tpu.memory_space<vmem>>, vector<1x8x72xf32>
    %16 = vector.shape_cast %15 : vector<1x8x72xf32> to vector<8x72xf32>
    %17 = arith.truncf %16 : vector<8x72xf32> to vector<8x72xbf16>
    %c2_14 = arith.constant 2 : index
    %c0_15 = arith.constant 0 : index
    %c0_16 = arith.constant 0 : index
    %18 = vector.load %arg2[%c2_14, %c0_15, %c0_16] : memref<3x72x64xbf16, #tpu.memory_space<vmem>>, vector<1x72x64xbf16>
    %19 = vector.shape_cast %18 : vector<1x72x64xbf16> to vector<72x64xbf16>
    %cst_17 = arith.constant dense<0.000000e+00> : vector<8x64xf32>
    %20 = tpu.matmul %17, %19, %cst_17 {dimension_numbers = #tpu.dot_dimension_numbers<[1], [0], [0], [1], [0, 0, 1, 1], [], []>} : vector<8x72xbf16>, vector<72x64xbf16>, vector<8x64xf32> -> vector<8x64xf32>
    %21 = arith.addf %14, %20 : vector<8x64xf32>
    %c0_18 = arith.constant 0 : index
    %c0_19 = arith.constant 0 : index
    %22 = vector.load %arg3[%c0_18, %c0_19] : memref<1x64xf32, #tpu.memory_space<vmem>>, vector<1x64xf32>
    %23 = vector.broadcast %22 : vector<1x64xf32> to vector<8x64xf32>
    %24 = arith.addf %21, %23 : vector<8x64xf32>
    %cst_20 = arith.constant 0.000000e+00 : f32
    %25 = vector.broadcast %cst_20 : f32 to vector<8x64xf32>
    %26 = arith.maximumf %24, %25 : vector<8x64xf32>
    %cst_21 = arith.constant 0.000000e+00 : f32
    %27 = vector.broadcast %cst_21 : f32 to vector<10x64xf32>
    %c0_22 = arith.constant 0 : index
    %c0_23 = arith.constant 0 : index
    %28 = vector.load %arg9[%c0_22, %c0_23] : memref<10x64xf32, #tpu.memory_space<vmem>>, vector<10x64xf32>
    tpu.vector_store %arg9[%c0_22, %c0_23], %27 {strides = array<i32>} : memref<10x64xf32, #tpu.memory_space<vmem>>, vector<10x64xf32>,
    %c1_24 = arith.constant 1 : index
    %c0_25 = arith.constant 0 : index
    %29 = vector.load %arg9[%c1_24, %c0_25] : memref<10x64xf32, #tpu.memory_space<vmem>>, vector<8x64xf32>
    tpu.vector_store %arg9[%c1_24, %c0_25], %26 {strides = array<i32>} : memref<10x64xf32, #tpu.memory_space<vmem>>, vector<8x64xf32>,
    %cst_26 = arith.constant 0.000000e+00 : f32
    %30 = vector.broadcast %cst_26 : f32 to vector<8x64xf32>
    %c0_27 = arith.constant 0 : index
    %c0_28 = arith.constant 0 : index
    %31 = vector.load %arg9[%c0_27, %c0_28] : memref<10x64xf32, #tpu.memory_space<vmem>>, vector<8x64xf32>
    %32 = arith.truncf %31 : vector<8x64xf32> to vector<8x64xbf16>
    %c0_29 = arith.constant 0 : index
    %c0_30 = arith.constant 0 : index
    %c0_31 = arith.constant 0 : index
    %33 = vector.load %arg4[%c0_29, %c0_30, %c0_31] : memref<3x64x64xbf16, #tpu.memory_space<vmem>>, vector<1x64x64xbf16>
    %34 = vector.shape_cast %33 : vector<1x64x64xbf16> to vector<64x64xbf16>
    %cst_32 = arith.constant dense<0.000000e+00> : vector<8x64xf32>
    %35 = tpu.matmul %32, %34, %cst_32 {dimension_numbers = #tpu.dot_dimension_numbers<[1], [0], [0], [1], [0, 0, 1, 1], [], []>} : vector<8x64xbf16>, vector<64x64xbf16>, vector<8x64xf32> -> vector<8x64xf32>
    %36 = arith.addf %30, %35 : vector<8x64xf32>
    %c1_33 = arith.constant 1 : index
    %c0_34 = arith.constant 0 : index
    %37 = vector.load %arg9[%c1_33, %c0_34] : memref<10x64xf32, #tpu.memory_space<vmem>>, vector<8x64xf32>
    %38 = arith.truncf %37 : vector<8x64xf32> to vector<8x64xbf16>
    %c1_35 = arith.constant 1 : index
    %c0_36 = arith.constant 0 : index
    %c0_37 = arith.constant 0 : index
    %39 = vector.load %arg4[%c1_35, %c0_36, %c0_37] : memref<3x64x64xbf16, #tpu.memory_space<vmem>>, vector<1x64x64xbf16>
    %40 = vector.shape_cast %39 : vector<1x64x64xbf16> to vector<64x64xbf16>
    %cst_38 = arith.constant dense<0.000000e+00> : vector<8x64xf32>
    %41 = tpu.matmul %38, %40, %cst_38 {dimension_numbers = #tpu.dot_dimension_numbers<[1], [0], [0], [1], [0, 0, 1, 1], [], []>} : vector<8x64xbf16>, vector<64x64xbf16>, vector<8x64xf32> -> vector<8x64xf32>
    %42 = arith.addf %36, %41 : vector<8x64xf32>
    %c2_39 = arith.constant 2 : index
    %c0_40 = arith.constant 0 : index
    %43 = vector.load %arg9[%c2_39, %c0_40] : memref<10x64xf32, #tpu.memory_space<vmem>>, vector<8x64xf32>
    %44 = arith.truncf %43 : vector<8x64xf32> to vector<8x64xbf16>
    %c2_41 = arith.constant 2 : index
    %c0_42 = arith.constant 0 : index
    %c0_43 = arith.constant 0 : index
    %45 = vector.load %arg4[%c2_41, %c0_42, %c0_43] : memref<3x64x64xbf16, #tpu.memory_space<vmem>>, vector<1x64x64xbf16>
    %46 = vector.shape_cast %45 : vector<1x64x64xbf16> to vector<64x64xbf16>
    %cst_44 = arith.constant dense<0.000000e+00> : vector<8x64xf32>
    %47 = tpu.matmul %44, %46, %cst_44 {dimension_numbers = #tpu.dot_dimension_numbers<[1], [0], [0], [1], [0, 0, 1, 1], [], []>} : vector<8x64xbf16>, vector<64x64xbf16>, vector<8x64xf32> -> vector<8x64xf32>
    %48 = arith.addf %42, %47 : vector<8x64xf32>
    %c0_45 = arith.constant 0 : index
    %c0_46 = arith.constant 0 : index
    %49 = vector.load %arg5[%c0_45, %c0_46] : memref<1x64xf32, #tpu.memory_space<vmem>>, vector<1x64xf32>
    %50 = vector.broadcast %49 : vector<1x64xf32> to vector<8x64xf32>
    %51 = arith.addf %48, %50 : vector<8x64xf32>
    %c0_47 = arith.constant 0 : index
    %c1_48 = arith.constant 1 : index
    %c0_49 = arith.constant 0 : index
    %52 = tpu.strided_load %arg1[%c0_47, %c1_48, %c0_49] {strides = array<i32: 1, 2, 1>} : memref<1x18x72xf32, #tpu.memory_space<vmem>>, vector<1x8x72xf32>
    %53 = vector.shape_cast %52 : vector<1x8x72xf32> to vector<8x72xf32>
    %54 = arith.truncf %53 : vector<8x72xf32> to vector<8x72xbf16>
    %c0_50 = arith.constant 0 : index
    %c0_51 = arith.constant 0 : index
    %55 = vector.load %arg6[%c0_50, %c0_51] : memref<72x64xbf16, #tpu.memory_space<vmem>>, vector<72x64xbf16>
    %cst_52 = arith.constant dense<0.000000e+00> : vector<8x64xf32>
    %56 = tpu.matmul %54, %55, %cst_52 {dimension_numbers = #tpu.dot_dimension_numbers<[1], [0], [0], [1], [0, 0, 1, 1], [], []>} : vector<8x72xbf16>, vector<72x64xbf16>, vector<8x64xf32> -> vector<8x64xf32>
    %57 = arith.addf %51, %56 : vector<8x64xf32>
    %c0_53 = arith.constant 0 : index
    %c0_54 = arith.constant 0 : index
    %58 = vector.load %arg7[%c0_53, %c0_54] : memref<1x64xf32, #tpu.memory_space<vmem>>, vector<1x64xf32>
    %59 = vector.broadcast %58 : vector<1x64xf32> to vector<8x64xf32>
    %60 = arith.addf %57, %59 : vector<8x64xf32>
    %cst_55 = arith.constant 0.000000e+00 : f32
    %61 = vector.broadcast %cst_55 : f32 to vector<8x64xf32>
    %62 = arith.maximumf %60, %61 : vector<8x64xf32>
    %c0_56 = arith.constant 0 : index
    %c0_57 = arith.constant 0 : index
    %c0_58 = arith.constant 0 : index
    %63 = vector.load %arg8[%c0_56, %c0_57, %c0_58] : memref<1x8x64xf32, #tpu.memory_space<vmem>>, vector<1x8x64xf32>
    %64 = vector.shape_cast %63 : vector<1x8x64xf32> to vector<8x64xf32>
    %65 = vector.shape_cast %62 : vector<8x64xf32> to vector<1x8x64xf32>
    tpu.vector_store %arg8[%c0_56, %c0_57, %c0_58], %65 {strides = array<i32>} : memref<1x8x64xf32, #tpu.memory_space<vmem>>, vector<1x8x64xf32>,
    return
  }
  func.func @transform_0(%arg0: i32) -> (i32, i32, i32) {
    %c0_i32 = arith.constant 0 : i32
    %c0_i32_0 = arith.constant 0 : i32
    %c0_i32_1 = arith.constant 0 : i32
    return %arg0, %c0_i32, %c0_i32_0 : i32, i32, i32
  }
  func.func @transform_1(%arg0: i32) -> (i32, i32, i32) {
    %c0_i32 = arith.constant 0 : i32
    %c0_i32_0 = arith.constant 0 : i32
    %c0_i32_1 = arith.constant 0 : i32
    %c0_i32_2 = arith.constant 0 : i32
    return %c0_i32, %c0_i32_0, %c0_i32_1 : i32, i32, i32
  }
  func.func @transform_2(%arg0: i32) -> (i32, i32) {
    %c0_i32 = arith.constant 0 : i32
    %c0_i32_0 = arith.constant 0 : i32
    %c0_i32_1 = arith.constant 0 : i32
    return %c0_i32, %c0_i32_0 : i32, i32
  }
  func.func @transform_3(%arg0: i32) -> (i32, i32, i32) {
    %c0_i32 = arith.constant 0 : i32
    %c0_i32_0 = arith.constant 0 : i32
    %c0_i32_1 = arith.constant 0 : i32
    %c0_i32_2 = arith.constant 0 : i32
    return %c0_i32, %c0_i32_0, %c0_i32_1 : i32, i32, i32
  }
  func.func @transform_4(%arg0: i32) -> (i32, i32) {
    %c0_i32 = arith.constant 0 : i32
    %c0_i32_0 = arith.constant 0 : i32
    %c0_i32_1 = arith.constant 0 : i32
    return %c0_i32, %c0_i32_0 : i32, i32
  }
  func.func @transform_5(%arg0: i32) -> (i32, i32) {
    %c0_i32 = arith.constant 0 : i32
    %c0_i32_0 = arith.constant 0 : i32
    %c0_i32_1 = arith.constant 0 : i32
    return %c0_i32, %c0_i32_0 : i32, i32
  }
  func.func @transform_6(%arg0: i32) -> (i32, i32) {
    %c0_i32 = arith.constant 0 : i32
    %c0_i32_0 = arith.constant 0 : i32
    %c0_i32_1 = arith.constant 0 : i32
    return %c0_i32, %c0_i32_0 : i32, i32
  }
  func.func @transform_7(%arg0: i32) -> (i32, i32, i32) {
    %c0_i32 = arith.constant 0 : i32
    %c0_i32_0 = arith.constant 0 : i32
    %c0_i32_1 = arith.constant 0 : i32
    return %arg0, %c0_i32, %c0_i32_0 : i32, i32, i32
  }
}

</mosaic_0001>

<llo_original>
// kernel: tpu_custom_call.1
$region0: #{tpu_custom_call.1}
  #allocation0 [shape = 'u32[]', space=smem, size = 0x4, offset = 0x4, fixed_abs, tag = 'smem constant byte address 0x4 - core index']
  #allocation1 [shape = 'u32[144,128]{1,0:T(1,128)}', space=vmem, size = 0x12000, scoped, tag = 'internal scratch']
  #allocation2 [shape = 'f32[10,64]{1,0:T(8,128)}', space=vmem, size = 0x2000, scoped, tag = 'scratch operand']
  %s0 = inlined_call_operand.vmem [shape: f32[2,18,72], index: 0, kind: input, shape index: {}]
  %s1 = inlined_call_operand.vmem [shape: bf16[3,72,64], index: 1, kind: input, shape index: {}]
  %s2 = inlined_call_operand.vmem [shape: f32[1,64], index: 2, kind: input, shape index: {}]
  %s3 = inlined_call_operand.vmem [shape: bf16[3,64,64], index: 3, kind: input, shape index: {}]
  %s4 = inlined_call_operand.vmem [shape: f32[1,64], index: 4, kind: input, shape index: {}]
  %s5 = inlined_call_operand.vmem [shape: bf16[72,64], index: 5, kind: input, shape index: {}]
  %s6 = inlined_call_operand.vmem [shape: f32[1,64], index: 6, kind: input, shape index: {}]
  %s7 = inlined_call_operand.hbm [shape: f32[2,8,64], index: 7, kind: output, shape index: {}]
  %s8 = sld [smem:[#allocation0]]
  $region61: #{tpu_custom_call.1} parent=0
    _
  %s10 = ssub.s32 1, %s8
  %s11 = scalar_select 0, %s10, %s8
  $region1: #{tpu_custom_call.1} parent=0
    #allocation3 [shape = 'u8[8192]{0}', space=vmem, size = 0x2000, scoped, tag = 'output window, operand 0']
    #allocation4 [shape = 's32[2]{0}', space=sflag, size = 0x8, scoped, tag = 'scoped memory for tpu_custom_call.1']
    %12 = vsyncpa [#allocation4], 0
    %s13 = scalar_lea.sflag [#allocation4], 1
    %14 = vsyncpa %s13, 0
    loop: start=0, step=1, limit=4
    $region2: #{tpu_custom_call.1} parent=1 // loop_pre_header
      _
    $region3: #{tpu_custom_call.1} parent=1 // loop_header
      %s16 = sphi 0, %s20
      %p17 = scmp.ge.s32.totalorder %s16, 4
      %s26 = sphi 0, %s28
      %s29 = sphi 0, %s26
      %s30 = sphi 0, %s29
      %s46 = sphi 0, %s30
      %s50 = sphi 0, %s50
      %s52 = sphi 0, %s50
      %s53 = sphi 0, %s52
      %s67 = sphi 0, %s53
      %s71 = sphi 0, %s71
      %s73 = sphi 0, %s71
      %s74 = sphi 0, %s73
      %s88 = sphi 0, %s74
      %s92 = sphi 0, %s92
      %s94 = sphi 0, %s92
      %s95 = sphi 0, %s94
      %s109 = sphi 0, %s95
      %s113 = sphi 0, %s113
      %s115 = sphi 0, %s113
      %s116 = sphi 0, %s115
      %s130 = sphi 0, %s116
      %s134 = sphi 0, %s134
      %s136 = sphi 0, %s134
      %s137 = sphi 0, %s136
      %s151 = sphi 0, %s137
      %s155 = sphi 0, %s155
      %s157 = sphi 0, %s155
      %s158 = sphi 0, %s157
      %s172 = sphi 0, %s158
      %s178 = sphi 0, %s180
      %s181 = sphi 0, %s178
      %s182 = sphi 0, %s181
      %s198 = sphi 0, %s182
    $region4: #{tpu_custom_call.1} parent=1 // loop_header_branch
      %19 = sbr.rel (%p17) target = $region8
    $region5: #{tpu_custom_call.1} parent=1 // loop_body
      %s21 = ssub.s32 %s16, 1
      %s22 = ssub.s32 %s16, 2
      %s23 = sadd.s32 %s16, 1
      %s24 = ssub.s32 %s16, %s23
      %p25 = scmp.eq.s32.totalorder %s24, 0
      %s27 = sadd.s32 %s26, 1
      %s28 = scalar_select %p25, %s26, %s27
      %p31 = pneg %p25
      %p32 = scmp.eq.s32.totalorder %s16, 1
      %p33 = por %p31, %p32
      %p34 = scmp.ne.s32.totalorder %s26, %s29
      %p35 = scmp.eq.s32.totalorder %s16, 0
      %p36 = por %p34, %p35
      %p37 = scmp.ne.s32.totalorder %s26, %s29
      %p38 = scmp.eq.s32.totalorder %s21, 1
      %p39 = por %p37, %p38
      %p40 = scmp.ne.s32.totalorder %s29, %s30
      %p41 = scmp.eq.s32.totalorder %s21, 0
      %p42 = por %p40, %p41
      %p43 = scmp.ne.s32.totalorder %s29, %s30
      %p44 = scmp.eq.s32.totalorder %s22, 1
      %p45 = por %p43, %p44
      %p47 = scmp.ne.s32.totalorder %s30, %s46
      %p48 = scmp.eq.s32.totalorder %s22, 0
      %p49 = por %p47, %p48
      %s51 = sadd.s32 %s50, 1
      %p54 = scmp.eq.s32.totalorder %s16, 1
      %p55 = scmp.ne.s32.totalorder %s50, %s52
      %p56 = scmp.eq.s32.totalorder %s16, 0
      %p57 = por %p55, %p56
      %p58 = scmp.ne.s32.totalorder %s50, %s52
      %p59 = scmp.eq.s32.totalorder %s21, 1
      %p60 = por %p58, %p59
      %p61 = scmp.ne.s32.totalorder %s52, %s53
      %p62 = scmp.eq.s32.totalorder %s21, 0
      %p63 = por %p61, %p62
      %p64 = scmp.ne.s32.totalorder %s52, %s53
      %p65 = scmp.eq.s32.totalorder %s22, 1
      %p66 = por %p64, %p65
      %p68 = scmp.ne.s32.totalorder %s53, %s67
      %p69 = scmp.eq.s32.totalorder %s22, 0
      %p70 = por %p68, %p69
      %s72 = sadd.s32 %s71, 1
      %p75 = scmp.eq.s32.totalorder %s16, 1
      %p76 = scmp.ne.s32.totalorder %s71, %s73
      %p77 = scmp.eq.s32.totalorder %s16, 0
      %p78 = por %p76, %p77
      %p79 = scmp.ne.s32.totalorder %s71, %s73
      %p80 = scmp.eq.s32.totalorder %s21, 1
      %p81 = por %p79, %p80
      %p82 = scmp.ne.s32.totalorder %s73, %s74
      %p83 = scmp.eq.s32.totalorder %s21, 0
      %p84 = por %p82, %p83
      %p85 = scmp.ne.s32.totalorder %s73, %s74
      %p86 = scmp.eq.s32.totalorder %s22, 1
      %p87 = por %p85, %p86
      %p89 = scmp.ne.s32.totalorder %s74, %s88
      %p90 = scmp.eq.s32.totalorder %s22, 0
      %p91 = por %p89, %p90
      %s93 = sadd.s32 %s92, 1
      %p96 = scmp.eq.s32.totalorder %s16, 1
      %p97 = scmp.ne.s32.totalorder %s92, %s94
      %p98 = scmp.eq.s32.totalorder %s16, 0
      %p99 = por %p97, %p98
      %p100 = scmp.ne.s32.totalorder %s92, %s94
      %p101 = scmp.eq.s32.totalorder %s21, 1
      %p102 = por %p100, %p101
      %p103 = scmp.ne.s32.totalorder %s94, %s95
      %p104 = scmp.eq.s32.totalorder %s21, 0
      %p105 = por %p103, %p104
      %p106 = scmp.ne.s32.totalorder %s94, %s95
      %p107 = scmp.eq.s32.totalorder %s22, 1
      %p108 = por %p106, %p107
      %p110 = scmp.ne.s32.totalorder %s95, %s109
      %p111 = scmp.eq.s32.totalorder %s22, 0
      %p112 = por %p110, %p111
      %s114 = sadd.s32 %s113, 1
      %p117 = scmp.eq.s32.totalorder %s16, 1
      %p118 = scmp.ne.s32.totalorder %s113, %s115
      %p119 = scmp.eq.s32.totalorder %s16, 0
      %p120 = por %p118, %p119
      %p121 = scmp.ne.s32.totalorder %s113, %s115
      %p122 = scmp.eq.s32.totalorder %s21, 1
      %p123 = por %p121, %p122
      %p124 = scmp.ne.s32.totalorder %s115, %s116
      %p125 = scmp.eq.s32.totalorder %s21, 0
      %p126 = por %p124, %p125
      %p127 = scmp.ne.s32.totalorder %s115, %s116
      %p128 = scmp.eq.s32.totalorder %s22, 1
      %p129 = por %p127, %p128
      %p131 = scmp.ne.s32.totalorder %s116, %s130
      %p132 = scmp.eq.s32.totalorder %s22, 0
      %p133 = por %p131, %p132
      %s135 = sadd.s32 %s134, 1
      %p138 = scmp.eq.s32.totalorder %s16, 1
      %p139 = scmp.ne.s32.totalorder %s134, %s136
      %p140 = scmp.eq.s32.totalorder %s16, 0
      %p141 = por %p139, %p140
      %p142 = scmp.ne.s32.totalorder %s134, %s136
      %p143 = scmp.eq.s32.totalorder %s21, 1
      %p144 = por %p142, %p143
      %p145 = scmp.ne.s32.totalorder %s136, %s137
      %p146 = scmp.eq.s32.totalorder %s21, 0
      %p147 = por %p145, %p146
      %p148 = scmp.ne.s32.totalorder %s136, %s137
      %p149 = scmp.eq.s32.totalorder %s22, 1
      %p150 = por %p148, %p149
      %p152 = scmp.ne.s32.totalorder %s137, %s151
      %p153 = scmp.eq.s32.totalorder %s22, 0
      %p154 = por %p152, %p153
      %s156 = sadd.s32 %s155, 1
      %p159 = scmp.eq.s32.totalorder %s16, 1
      %p160 = scmp.ne.s32.totalorder %s155, %s157
      %p161 = scmp.eq.s32.totalorder %s16, 0
      %p162 = por %p160, %p161
      %p163 = scmp.ne.s32.totalorder %s155, %s157
      %p164 = scmp.eq.s32.totalorder %s21, 1
      %p165 = por %p163, %p164
      %p166 = scmp.ne.s32.totalorder %s157, %s158
      %p167 = scmp.eq.s32.totalorder %s21, 0
      %p168 = por %p166, %p167
      %p169 = scmp.ne.s32.totalorder %s157, %s158
      %p170 = scmp.eq.s32.totalorder %s22, 1
      %p171 = por %p169, %p170
      %p173 = scmp.ne.s32.totalorder %s158, %s172
      %p174 = scmp.eq.s32.totalorder %s22, 0
      %p175 = por %p173, %p174
      %s176 = ssub.s32 %s16, %s23
      %p177 = scmp.eq.s32.totalorder %s176, 0
      %s179 = sadd.s32 %s178, 1
      %s180 = scalar_select %p177, %s178, %s179
      %p183 = pneg %p177
      %p184 = scmp.eq.s32.totalorder %s16, 1
      %p185 = por %p183, %p184
      %p186 = scmp.ne.s32.totalorder %s178, %s181
      %p187 = scmp.eq.s32.totalorder %s16, 0
      %p188 = por %p186, %p187
      %p189 = scmp.ne.s32.totalorder %s178, %s181
      %p190 = scmp.eq.s32.totalorder %s21, 1
      %p191 = por %p189, %p190
      %p192 = scmp.ne.s32.totalorder %s181, %s182
      %p193 = scmp.eq.s32.totalorder %s21, 0
      %p194 = por %p192, %p193
      %p195 = scmp.ne.s32.totalorder %s181, %s182
      %p196 = scmp.eq.s32.totalorder %s22, 1
      %p197 = por %p195, %p196
      %p199 = scmp.ne.s32.totalorder %s182, %s198
      %p200 = scmp.eq.s32.totalorder %s22, 0
      %p201 = por %p199, %p200
      %p202 = scmp.le.s32.totalorder 1, %s16
      %p203 = scmp.lt.s32.totalorder %s16, 3
      %p204 = pnand %p202, %p203
      %p205 = pneg %p204
      // Predicated region
      $region9: #{tpu_custom_call.1} parent=5 // pred_check
        _
      $region10: #{tpu_custom_call.1} parent=5 // pred_check_branch
        %207 = sbr.rel (%p204) target = $region12
      $region11: #{tpu_custom_call.1} parent=5 // pred_region
        %s208 = ssub.s32 %s16, 1
        // Predicated region
        $region13: #{tpu_custom_call.1} parent=11 // pred_check
          %p209 = pneg %p63
        $region14: #{tpu_custom_call.1} parent=11 // pred_check_branch
          %211 = sbr.rel (%p209) target = $region16
        $region15: #{tpu_custom_call.1} parent=11 // pred_region
          _
        $region16: #{tpu_custom_call.1} parent=11 // pred_fallthru
          _
        // Predicated region
        $region17: #{tpu_custom_call.1} parent=11 // pred_check
          %p212 = pneg %p84
        $region18: #{tpu_custom_call.1} parent=11 // pred_check_branch
          %214 = sbr.rel (%p212) target = $region20
        $region19: #{tpu_custom_call.1} parent=11 // pred_region
          _
        $region20: #{tpu_custom_call.1} parent=11 // pred_fallthru
          _
        // Predicated region
        $region21: #{tpu_custom_call.1} parent=11 // pred_check
          %p215 = pneg %p105
        $region22: #{tpu_custom_call.1} parent=11 // pred_check_branch
          %217 = sbr.rel (%p215) target = $region24
        $region23: #{tpu_custom_call.1} parent=11 // pred_region
          _
        $region24: #{tpu_custom_call.1} parent=11 // pred_fallthru
          _
        // Predicated region
        $region25: #{tpu_custom_call.1} parent=11 // pred_check
          %p218 = pneg %p126
        $region26: #{tpu_custom_call.1} parent=11 // pred_check_branch
          %220 = sbr.rel (%p218) target = $region28
        $region27: #{tpu_custom_call.1} parent=11 // pred_region
          _
        $region28: #{tpu_custom_call.1} parent=11 // pred_fallthru
          _
        // Predicated region
        $region29: #{tpu_custom_call.1} parent=11 // pred_check
          %p221 = pneg %p147
        $region30: #{tpu_custom_call.1} parent=11 // pred_check_branch
          %223 = sbr.rel (%p221) target = $region32
        $region31: #{tpu_custom_call.1} parent=11 // pred_region
          _
        $region32: #{tpu_custom_call.1} parent=11 // pred_fallthru
          _
        // Predicated region
        $region33: #{tpu_custom_call.1} parent=11 // pred_check
          %p224 = pneg %p168
        $region34: #{tpu_custom_call.1} parent=11 // pred_check_branch
          %226 = sbr.rel (%p224) target = $region36
        $region35: #{tpu_custom_call.1} parent=11 // pred_region
          _
        $region36: #{tpu_custom_call.1} parent=11 // pred_fallthru
          _
      $region12: #{tpu_custom_call.1} parent=5 // pred_fallthru
        _
      %p227 = scmp.lt.s32.totalorder %s16, 2
      // Predicated region
      $region37: #{tpu_custom_call.1} parent=5 // pred_check
        %p228 = pneg %p227
      $region38: #{tpu_custom_call.1} parent=5 // pred_check_branch
        %230 = sbr.rel (%p228) target = $region40
      $region39: #{tpu_custom_call.1} parent=5 // pred_region
        // Predicated region
        $region41: #{tpu_custom_call.1} parent=39 // pred_check
          %p231 = pneg %p36
        $region42: #{tpu_custom_call.1} parent=39 // pred_check_branch
          %233 = sbr.rel (%p231) target = $region44
        $region43: #{tpu_custom_call.1} parent=39 // pred_region
          %p234 = scmp.lt.s32.totalorder %s16, 1
          %s235 = scalar_select %p234, %s16, 1
          %s236 = smul.addr %s235, 3
          %s237 = smul.addr %s236, 8
          %s238 = scalar_lea.vmem %s0, %s237
        $region44: #{tpu_custom_call.1} parent=39 // pred_fallthru
          _
      $region40: #{tpu_custom_call.1} parent=5 // pred_fallthru
        _
      %p239 = scmp.le.s32.totalorder 1, %s16
      %p240 = scmp.lt.s32.totalorder %s16, 3
      %p241 = pnand %p239, %p240
      %p242 = pneg %p241
      // Predicated region
      $region45: #{tpu_custom_call.1} parent=5 // pred_check
        _
      $region46: #{tpu_custom_call.1} parent=5 // pred_check_branch
        %244 = sbr.rel (%p241) target = $region48
      $region47: #{tpu_custom_call.1} parent=5 // pred_region
        %s245 = ssub.s32 %s16, 1
        %p246 = scmp.lt.s32.totalorder %s21, 1
        %s247 = scalar_select %p246, %s21, 1
        %s248 = smul.addr %s247, 3
        %s249 = smul.addr %s248, 8
        %s250 = scalar_lea.vmem %s0, %s249
        %p251 = pneg %p42
        %p252 = pneg %p39
        %p253 = pneg %p63
        %p254 = pneg %p60
        %p255 = pneg %p84
        %p256 = pneg %p81
        %p257 = pneg %p105
        %p258 = pneg %p102
        %p259 = pneg %p126
        %p260 = pneg %p123
        %p261 = pneg %p147
        %p262 = pneg %p144
        %p263 = pneg %p168
        %p264 = pneg %p165
        %p265 = pneg %p194
        %p266 = pneg %p191
        %s267 = sand.u32 %s181, 1
        %s268 = scalar_lea.sflag [#allocation4], %s267
        %s269 = sand.u32 %s181, 1
        %s270 = smul.addr %s269, 8
        %s271 = scalar_lea.vmem [#allocation3], %s270
        %p272 = scmp.lt.s32.totalorder %s21, 1
        %s273 = scalar_select %p272, %s21, 1
        %s274 = smul.addr %s273, 3
        %s275 = smul.addr %s274, 8
        %s276 = scalar_lea.vmem %s0, %s275
        %v278 = vld [vmem:[%s276] ss:$2 sm:$0xff]
        %v279 = vpack.c.bf16 %v278, %v278
        %v280 = vld [vmem:[%s1] sm:$0xf]
        %v281 = vld [vmem:[%s1 + $0x4] sm:$0xf]
        %v282 = vld [vmem:[%s1 + $0x8] sm:$0xf]
        %v283 = vld [vmem:[%s1 + $0xc] sm:$0xf]
        %v284 = vld [vmem:[%s1 + $0x10] sm:$0xf]
        %v285 = vld [vmem:[%s1 + $0x14] sm:$0xf]
        %v286 = vld [vmem:[%s1 + $0x18] sm:$0xf]
        %v287 = vld [vmem:[%s1 + $0x1c] sm:$0xf]
        %v288 = vld [vmem:[%s1 + $0x20] sm:$0xf]
        %s289 = scalar_lea.vmem %s276, 1
        %v290 = vld [vmem:[%s289] ss:$2 sm:$0xff]
        %v291 = vpack.c.bf16 %v290, %v290
        %s292 = scalar_lea.vmem %s1, 36
        %v293 = vld [vmem:[%s292] sm:$0xf]
        %v294 = vld [vmem:[%s292 + $0x4] sm:$0xf]
        %v295 = vld [vmem:[%s292 + $0x8] sm:$0xf]
        %v296 = vld [vmem:[%s292 + $0xc] sm:$0xf]
        %v297 = vld [vmem:[%s292 + $0x10] sm:$0xf]
        %v298 = vld [vmem:[%s292 + $0x14] sm:$0xf]
        %v299 = vld [vmem:[%s292 + $0x18] sm:$0xf]
        %v300 = vld [vmem:[%s292 + $0x1c] sm:$0xf]
        %v301 = vld [vmem:[%s292 + $0x20] sm:$0xf]
        %v311 = vunpack.c.l.b16 %v293
        %v312 = vunpack.c.l.b16 %v294
        %v313 = vunpack.c.l.b16 %v295
        %v314 = vunpack.c.l.b16 %v296
        %v315 = vunpack.c.l.b16 %v297
        %v316 = vunpack.c.l.b16 %v298
        %v317 = vunpack.c.l.b16 %v299
        %v318 = vunpack.c.l.b16 %v300
        %v319 = vunpack.c.l.b16 %v301
        %v320 = vpack.c.b16 %v312, %v311
        %v321 = vpack.c.b16 %v314, %v313
        %v322 = vpack.c.b16 %v316, %v315
        %v323 = vpack.c.b16 %v318, %v317
        %v324 = vpack.c.b16 %v319, %v319
        %vm329 = vcmask 588800
        %v331 = vsel %vm329, %v291, 0
        %vm333 = vcmask 1043456
        %v335 = vsel %vm333, %v324, 0
        %337 = vmatprep.subr.bf16.mxu0 0
        %338 = vmatpush1.bf16.msra.mxu0 %v320
        %339 = vmatprep.subr.bf16.mxu0 0
        %340 = vmatpush1.bf16.msra.mxu0 %v321
        %341 = vmatprep.subr.bf16.mxu0 0
        %342 = vmatpush1.bf16.msra.mxu0 %v322
        %343 = vmatprep.subr.bf16.mxu0 0
        %344 = vmatpush1.bf16.msra.mxu0 %v323
        %345 = vmatprep.subr.bf16.mxu0 0
        %346 = vmatpush1.bf16.msra.mxu0 %v335
        %347 = vmatprep.subr.bf16.mxu0 0
        %348 = vmatpush1.bf16.msra.mxu0 0
        %349 = vmatprep.subr.bf16.mxu0 0
        %350 = vmatpush1.bf16.msra.mxu0 0
        %351 = vmatprep.subr.bf16.mxu0 0
        %352 = vmatpush1.bf16.msra.mxu0 0
        %353 = vmatprep.subr.bf16.mxu0 0
        %354 = vmatpush1.bf16.msra.mxu0 0
        %355 = vmatprep.subr.bf16.mxu0 0
        %356 = vmatpush1.bf16.msra.mxu0 0
        %357 = vmatprep.subr.bf16.mxu0 0
        %358 = vmatpush1.bf16.msra.mxu0 0
        %359 = vmatprep.subr.bf16.mxu0 0
        %360 = vmatpush1.bf16.msra.mxu0 0
        %361 = vmatprep.subr.bf16.mxu0 0
        %362 = vmatpush1.bf16.msra.mxu0 0
        %363 = vmatprep.subr.bf16.mxu0 0
        %364 = vmatpush1.bf16.msra.mxu0 0
        %365 = vmatprep.subr.bf16.mxu0 0
        %366 = vmatpush1.bf16.msra.mxu0 0
        %367 = vmatprep.subr.bf16.mxu0 0
        %368 = vmatpush1.bf16.msra.mxu0 0
        %369 = vmatprep.mubr.bf16.mxu0 0
        %370 = vmatmul.mubr.bf16.gmra.mrb[0].mxu0 %v331
        %v371 = vpop.f32.mrb[0].mxu0
        %v372 = vadd.f32 0.0, %v371
        %v373 = vpop.f32.mrb[0].mxu0
        %v374 = vpop.f32.mrb[0].mxu0
        %v375 = vpop.f32.mrb[0].mxu0
        %376 = vdwg.mxu0
        %v386 = vunpack.c.l.b16 %v280
        %v387 = vunpack.c.l.b16 %v281
        %v388 = vunpack.c.l.b16 %v282
        %v389 = vunpack.c.l.b16 %v283
        %v390 = vunpack.c.l.b16 %v284
        %v391 = vunpack.c.l.b16 %v285
        %v392 = vunpack.c.l.b16 %v286
        %v393 = vunpack.c.l.b16 %v287
        %v394 = vunpack.c.l.b16 %v288
        %v395 = vpack.c.b16 %v387, %v386
        %v396 = vpack.c.b16 %v389, %v388
        %v397 = vpack.c.b16 %v391, %v390
        %v398 = vpack.c.b16 %v393, %v392
        %v399 = vpack.c.b16 %v394, %v394
        %v405 = vsel %vm329, %v279, 0
        %v408 = vsel %vm333, %v399, 0
        %410 = vmatprep.subr.bf16.mxu0 0
        %411 = vmatpush1.bf16.msra.mxu0 %v395
        %412 = vmatprep.subr.bf16.mxu0 0
        %413 = vmatpush1.bf16.msra.mxu0 %v396
        %414 = vmatprep.subr.bf16.mxu0 0
        %415 = vmatpush1.bf16.msra.mxu0 %v397
        %416 = vmatprep.subr.bf16.mxu0 0
        %417 = vmatpush1.bf16.msra.mxu0 %v398
        %418 = vmatprep.subr.bf16.mxu0 0
        %419 = vmatpush1.bf16.msra.mxu0 %v408
        %420 = vmatprep.subr.bf16.mxu0 0
        %421 = vmatpush1.bf16.msra.mxu0 0
        %422 = vmatprep.subr.bf16.mxu0 0
        %423 = vmatpush1.bf16.msra.mxu0 0
        %424 = vmatprep.subr.bf16.mxu0 0
        %425 = vmatpush1.bf16.msra.mxu0 0
        %426 = vmatprep.subr.bf16.mxu0 0
        %427 = vmatpush1.bf16.msra.mxu0 0
        %428 = vmatprep.subr.bf16.mxu0 0
        %429 = vmatpush1.bf16.msra.mxu0 0
        %430 = vmatprep.subr.bf16.mxu0 0
        %431 = vmatpush1.bf16.msra.mxu0 0
        %432 = vmatprep.subr.bf16.mxu0 0
        %433 = vmatpush1.bf16.msra.mxu0 0
        %434 = vmatprep.subr.bf16.mxu0 0
        %435 = vmatpush1.bf16.msra.mxu0 0
        %436 = vmatprep.subr.bf16.mxu0 0
        %437 = vmatpush1.bf16.msra.mxu0 0
        %438 = vmatprep.subr.bf16.mxu0 0
        %439 = vmatpush1.bf16.msra.mxu0 0
        %440 = vmatprep.subr.bf16.mxu0 0
        %441 = vmatpush1.bf16.msra.mxu0 0
        %442 = vmatprep.mubr.bf16.mxu0 0
        %443 = vmatmul.mubr.bf16.gmra.mrb[0].mxu0 %v405
        %v444 = vpop.f32.mrb[0].mxu0
        %v445 = vadd.f32 %v372, %v444
        %v446 = vpop.f32.mrb[0].mxu0
        %v447 = vpop.f32.mrb[0].mxu0
        %v448 = vpop.f32.mrb[0].mxu0
        %449 = vdwg.mxu0
        %s450 = scalar_lea.vmem %s276, 2
        %v451 = vld [vmem:[%s450] ss:$2 sm:$0xff]
        %v452 = vpack.c.bf16 %v451, %v451
        %s453 = scalar_lea.vmem %s1, 72
        %v454 = vld [vmem:[%s453] sm:$0xf]
        %v455 = vld [vmem:[%s453 + $0x4] sm:$0xf]
        %v456 = vld [vmem:[%s453 + $0x8] sm:$0xf]
        %v457 = vld [vmem:[%s453 + $0xc] sm:$0xf]
        %v458 = vld [vmem:[%s453 + $0x10] sm:$0xf]
        %v459 = vld [vmem:[%s453 + $0x14] sm:$0xf]
        %v460 = vld [vmem:[%s453 + $0x18] sm:$0xf]
        %v461 = vld [vmem:[%s453 + $0x1c] sm:$0xf]
        %v462 = vld [vmem:[%s453 + $0x20] sm:$0xf]
        %v472 = vunpack.c.l.b16 %v454
        %v473 = vunpack.c.l.b16 %v455
        %v474 = vunpack.c.l.b16 %v456
        %v475 = vunpack.c.l.b16 %v457
        %v476 = vunpack.c.l.b16 %v458
        %v477 = vunpack.c.l.b16 %v459
        %v478 = vunpack.c.l.b16 %v460
        %v479 = vunpack.c.l.b16 %v461
        %v480 = vunpack.c.l.b16 %v462
        %v481 = vpack.c.b16 %v473, %v472
        %v482 = vpack.c.b16 %v475, %v474
        %v483 = vpack.c.b16 %v477, %v476
        %v484 = vpack.c.b16 %v479, %v478
        %v485 = vpack.c.b16 %v480, %v480
        %v491 = vsel %vm329, %v452, 0
        %v494 = vsel %vm333, %v485, 0
        %496 = vmatprep.subr.bf16.mxu0 0
        %497 = vmatpush1.bf16.msra.mxu0 %v481
        %498 = vmatprep.subr.bf16.mxu0 0
        %499 = vmatpush1.bf16.msra.mxu0 %v482
        %500 = vmatprep.subr.bf16.mxu0 0
        %501 = vmatpush1.bf16.msra.mxu0 %v483
        %502 = vmatprep.subr.bf16.mxu0 0
        %503 = vmatpush1.bf16.msra.mxu0 %v484
        %504 = vmatprep.subr.bf16.mxu0 0
        %505 = vmatpush1.bf16.msra.mxu0 %v494
        %506 = vmatprep.subr.bf16.mxu0 0
        %507 = vmatpush1.bf16.msra.mxu0 0
        %508 = vmatprep.subr.bf16.mxu0 0
        %509 = vmatpush1.bf16.msra.mxu0 0
        %510 = vmatprep.subr.bf16.mxu0 0
        %511 = vmatpush1.bf16.msra.mxu0 0
        %512 = vmatprep.subr.bf16.mxu0 0
        %513 = vmatpush1.bf16.msra.mxu0 0
        %514 = vmatprep.subr.bf16.mxu0 0
        %515 = vmatpush1.bf16.msra.mxu0 0
        %516 = vmatprep.subr.bf16.mxu0 0
        %517 = vmatpush1.bf16.msra.mxu0 0
        %518 = vmatprep.subr.bf16.mxu0 0
        %519 = vmatpush1.bf16.msra.mxu0 0
        %520 = vmatprep.subr.bf16.mxu0 0
        %521 = vmatpush1.bf16.msra.mxu0 0
        %522 = vmatprep.subr.bf16.mxu0 0
        %523 = vmatpush1.bf16.msra.mxu0 0
        %524 = vmatprep.subr.bf16.mxu0 0
        %525 = vmatpush1.bf16.msra.mxu0 0
        %526 = vmatprep.subr.bf16.mxu0 0
        %527 = vmatpush1.bf16.msra.mxu0 0
        %528 = vmatprep.mubr.bf16.mxu0 0
        %529 = vmatmul.mubr.bf16.gmra.mrb[0].mxu0 %v491
        %v530 = vpop.f32.mrb[0].mxu0
        %v531 = vadd.f32 0.0, %v530
        %v532 = vpop.f32.mrb[0].mxu0
        %v533 = vpop.f32.mrb[0].mxu0
        %v534 = vpop.f32.mrb[0].mxu0
        %535 = vdwg.mxu0
        %v536 = vadd.f32 %v445, %v531
        %v537 = vld [vmem:[%s2] sm:$0x1]
        %v539 = vlaneseq
        %v540 = vshrl.u32 %v539, 7
        %v541 = vsub.s32 0, %v540
        %v542 = vrot.slane %v537, %v541
        %v544 = vadd.f32 %v536, %v542
        %v545 = vmax.f32 %v544, 0.0
        %vm546 = vcmask 523264
        %547 = vst.msk [vmem:[#allocation2] sm:$0xff] %vm546, 0.0
        %vm548 = vcmask 517120
        %549 = vst.msk [vmem:[#allocation2 + $0x8] sm:$0x3] %vm548, 0.0
        %550 = vst.msk [vmem:[#allocation2 + $0x1] sm:$0xff] %vm546, %v545
        %v551 = vld [vmem:[#allocation2] sm:$0xff]
        %v552 = vpack.c.bf16 %v551, %v551
        %v553 = vld [vmem:[%s3] sm:$0xf]
        %v554 = vld [vmem:[%s3 + $0x4] sm:$0xf]
        %v555 = vld [vmem:[%s3 + $0x8] sm:$0xf]
        %v556 = vld [vmem:[%s3 + $0xc] sm:$0xf]
        %v557 = vld [vmem:[%s3 + $0x10] sm:$0xf]
        %v558 = vld [vmem:[%s3 + $0x14] sm:$0xf]
        %v559 = vld [vmem:[%s3 + $0x18] sm:$0xf]
        %v560 = vld [vmem:[%s3 + $0x1c] sm:$0xf]
        %v561 = vld [vmem:[#allocation2 + $0x1] sm:$0xff]
        %v562 = vpack.c.bf16 %v561, %v561
        %s563 = scalar_lea.vmem %s3, 32
        %v564 = vld [vmem:[%s563] sm:$0xf]
        %v565 = vld [vmem:[%s563 + $0x4] sm:$0xf]
        %v566 = vld [vmem:[%s563 + $0x8] sm:$0xf]
        %v567 = vld [vmem:[%s563 + $0xc] sm:$0xf]
        %v568 = vld [vmem:[%s563 + $0x10] sm:$0xf]
        %v569 = vld [vmem:[%s563 + $0x14] sm:$0xf]
        %v570 = vld [vmem:[%s563 + $0x18] sm:$0xf]
        %v571 = vld [vmem:[%s563 + $0x1c] sm:$0xf]
        %v580 = vunpack.c.l.b16 %v564
        %v581 = vunpack.c.l.b16 %v565
        %v582 = vunpack.c.l.b16 %v566
        %v583 = vunpack.c.l.b16 %v567
        %v584 = vunpack.c.l.b16 %v568
        %v585 = vunpack.c.l.b16 %v569
        %v586 = vunpack.c.l.b16 %v570
        %v587 = vunpack.c.l.b16 %v571
        %v588 = vpack.c.b16 %v581, %v580
        %v589 = vpack.c.b16 %v583, %v582
        %v590 = vpack.c.b16 %v585, %v584
        %v591 = vpack.c.b16 %v587, %v586
        %v597 = vsel %vm546, %v562, 0
        %599 = vmatprep.subr.bf16.mxu0 0
        %600 = vmatpush1.bf16.msra.mxu0 %v588
        %601 = vmatprep.subr.bf16.mxu0 0
        %602 = vmatpush1.bf16.msra.mxu0 %v589
        %603 = vmatprep.subr.bf16.mxu0 0
        %604 = vmatpush1.bf16.msra.mxu0 %v590
        %605 = vmatprep.subr.bf16.mxu0 0
        %606 = vmatpush1.bf16.msra.mxu0 %v591
        %607 = vmatprep.subr.bf16.mxu0 0
        %608 = vmatpush1.bf16.msra.mxu0 0
        %609 = vmatprep.subr.bf16.mxu0 0
        %610 = vmatpush1.bf16.msra.mxu0 0
        %611 = vmatprep.subr.bf16.mxu0 0
        %612 = vmatpush1.bf16.msra.mxu0 0
        %613 = vmatprep.subr.bf16.mxu0 0
        %614 = vmatpush1.bf16.msra.mxu0 0
        %615 = vmatprep.subr.bf16.mxu0 0
        %616 = vmatpush1.bf16.msra.mxu0 0
        %617 = vmatprep.subr.bf16.mxu0 0
        %618 = vmatpush1.bf16.msra.mxu0 0
        %619 = vmatprep.subr.bf16.mxu0 0
        %620 = vmatpush1.bf16.msra.mxu0 0
        %621 = vmatprep.subr.bf16.mxu0 0
        %622 = vmatpush1.bf16.msra.mxu0 0
        %623 = vmatprep.subr.bf16.mxu0 0
        %624 = vmatpush1.bf16.msra.mxu0 0
        %625 = vmatprep.subr.bf16.mxu0 0
        %626 = vmatpush1.bf16.msra.mxu0 0
        %627 = vmatprep.subr.bf16.mxu0 0
        %628 = vmatpush1.bf16.msra.mxu0 0
        %629 = vmatprep.subr.bf16.mxu0 0
        %630 = vmatpush1.bf16.msra.mxu0 0
        %631 = vmatprep.mubr.bf16.mxu0 0
        %632 = vmatmul.mubr.bf16.gmra.mrb[0].mxu0 %v597
        %v633 = vpop.f32.mrb[0].mxu0
        %v634 = vadd.f32 0.0, %v633
        %v635 = vpop.f32.mrb[0].mxu0
        %v636 = vpop.f32.mrb[0].mxu0
        %v637 = vpop.f32.mrb[0].mxu0
        %638 = vdwg.mxu0
        %v647 = vunpack.c.l.b16 %v553
        %v648 = vunpack.c.l.b16 %v554
        %v649 = vunpack.c.l.b16 %v555
        %v650 = vunpack.c.l.b16 %v556
        %v651 = vunpack.c.l.b16 %v557
        %v652 = vunpack.c.l.b16 %v558
        %v653 = vunpack.c.l.b16 %v559
        %v654 = vunpack.c.l.b16 %v560
        %v655 = vpack.c.b16 %v648, %v647
        %v656 = vpack.c.b16 %v650, %v649
        %v657 = vpack.c.b16 %v652, %v651
        %v658 = vpack.c.b16 %v654, %v653
        %v664 = vsel %vm546, %v552, 0
        %666 = vmatprep.subr.bf16.mxu0 0
        %667 = vmatpush1.bf16.msra.mxu0 %v655
        %668 = vmatprep.subr.bf16.mxu0 0
        %669 = vmatpush1.bf16.msra.mxu0 %v656
        %670 = vmatprep.subr.bf16.mxu0 0
        %671 = vmatpush1.bf16.msra.mxu0 %v657
        %672 = vmatprep.subr.bf16.mxu0 0
        %673 = vmatpush1.bf16.msra.mxu0 %v658
        %674 = vmatprep.subr.bf16.mxu0 0
        %675 = vmatpush1.bf16.msra.mxu0 0
        %676 = vmatprep.subr.bf16.mxu0 0
        %677 = vmatpush1.bf16.msra.mxu0 0
        %678 = vmatprep.subr.bf16.mxu0 0
        %679 = vmatpush1.bf16.msra.mxu0 0
        %680 = vmatprep.subr.bf16.mxu0 0
        %681 = vmatpush1.bf16.msra.mxu0 0
        %682 = vmatprep.subr.bf16.mxu0 0
        %683 = vmatpush1.bf16.msra.mxu0 0
        %684 = vmatprep.subr.bf16.mxu0 0
        %685 = vmatpush1.bf16.msra.mxu0 0
        %686 = vmatprep.subr.bf16.mxu0 0
        %687 = vmatpush1.bf16.msra.mxu0 0
        %688 = vmatprep.subr.bf16.mxu0 0
        %689 = vmatpush1.bf16.msra.mxu0 0
        %690 = vmatprep.subr.bf16.mxu0 0
        %691 = vmatpush1.bf16.msra.mxu0 0
        %692 = vmatprep.subr.bf16.mxu0 0
        %693 = vmatpush1.bf16.msra.mxu0 0
        %694 = vmatprep.subr.bf16.mxu0 0
        %695 = vmatpush1.bf16.msra.mxu0 0
        %696 = vmatprep.subr.bf16.mxu0 0
        %697 = vmatpush1.bf16.msra.mxu0 0
        %698 = vmatprep.mubr.bf16.mxu0 0
        %699 = vmatmul.mubr.bf16.gmra.mrb[0].mxu0 %v664
        %v700 = vpop.f32.mrb[0].mxu0
        %v701 = vadd.f32 %v634, %v700
        %v702 = vpop.f32.mrb[0].mxu0
        %v703 = vpop.f32.mrb[0].mxu0
        %v704 = vpop.f32.mrb[0].mxu0
        %705 = vdwg.mxu0
        %v706 = vld [vmem:[#allocation2 + $0x2] sm:$0xff]
        %v707 = vpack.c.bf16 %v706, %v706
        %s708 = scalar_lea.vmem %s3, 64
        %v709 = vld [vmem:[%s708] sm:$0xf]
        %v710 = vld [vmem:[%s708 + $0x4] sm:$0xf]
        %v711 = vld [vmem:[%s708 + $0x8] sm:$0xf]
        %v712 = vld [vmem:[%s708 + $0xc] sm:$0xf]
        %v713 = vld [vmem:[%s708 + $0x10] sm:$0xf]
        %v714 = vld [vmem:[%s708 + $0x14] sm:$0xf]
        %v715 = vld [vmem:[%s708 + $0x18] sm:$0xf]
        %v716 = vld [vmem:[%s708 + $0x1c] sm:$0xf]
        %v725 = vunpack.c.l.b16 %v709
        %v726 = vunpack.c.l.b16 %v710
        %v727 = vunpack.c.l.b16 %v711
        %v728 = vunpack.c.l.b16 %v712
        %v729 = vunpack.c.l.b16 %v713
        %v730 = vunpack.c.l.b16 %v714
        %v731 = vunpack.c.l.b16 %v715
        %v732 = vunpack.c.l.b16 %v716
        %v733 = vpack.c.b16 %v726, %v725
        %v734 = vpack.c.b16 %v728, %v727
        %v735 = vpack.c.b16 %v730, %v729
        %v736 = vpack.c.b16 %v732, %v731
        %v742 = vsel %vm546, %v707, 0
        %744 = vmatprep.subr.bf16.mxu0 0
        %745 = vmatpush1.bf16.msra.mxu0 %v733
        %746 = vmatprep.subr.bf16.mxu0 0
        %747 = vmatpush1.bf16.msra.mxu0 %v734
        %748 = vmatprep.subr.bf16.mxu0 0
        %749 = vmatpush1.bf16.msra.mxu0 %v735
        %750 = vmatprep.subr.bf16.mxu0 0
        %751 = vmatpush1.bf16.msra.mxu0 %v736
        %752 = vmatprep.subr.bf16.mxu0 0
        %753 = vmatpush1.bf16.msra.mxu0 0
        %754 = vmatprep.subr.bf16.mxu0 0
        %755 = vmatpush1.bf16.msra.mxu0 0
        %756 = vmatprep.subr.bf16.mxu0 0
        %757 = vmatpush1.bf16.msra.mxu0 0
        %758 = vmatprep.subr.bf16.mxu0 0
        %759 = vmatpush1.bf16.msra.mxu0 0
        %760 = vmatprep.subr.bf16.mxu0 0
        %761 = vmatpush1.bf16.msra.mxu0 0
        %762 = vmatprep.subr.bf16.mxu0 0
        %763 = vmatpush1.bf16.msra.mxu0 0
        %764 = vmatprep.subr.bf16.mxu0 0
        %765 = vmatpush1.bf16.msra.mxu0 0
        %766 = vmatprep.subr.bf16.mxu0 0
        %767 = vmatpush1.bf16.msra.mxu0 0
        %768 = vmatprep.subr.bf16.mxu0 0
        %769 = vmatpush1.bf16.msra.mxu0 0
        %770 = vmatprep.subr.bf16.mxu0 0
        %771 = vmatpush1.bf16.msra.mxu0 0
        %772 = vmatprep.subr.bf16.mxu0 0
        %773 = vmatpush1.bf16.msra.mxu0 0
        %774 = vmatprep.subr.bf16.mxu0 0
        %775 = vmatpush1.bf16.msra.mxu0 0
        %776 = vmatprep.mubr.bf16.mxu0 0
        %777 = vmatmul.mubr.bf16.gmra.mrb[0].mxu0 %v742
        %v778 = vpop.f32.mrb[0].mxu0
        %v779 = vadd.f32 0.0, %v778
        %v780 = vpop.f32.mrb[0].mxu0
        %v781 = vpop.f32.mrb[0].mxu0
        %v782 = vpop.f32.mrb[0].mxu0
        %783 = vdwg.mxu0
        %v784 = vadd.f32 %v701, %v779
        %v785 = vld [vmem:[%s4] sm:$0x1]
        %v787 = vlaneseq
        %v788 = vshrl.u32 %v787, 7
        %v789 = vsub.s32 0, %v788
        %v790 = vrot.slane %v785, %v789
        %v792 = vadd.f32 %v784, %v790
        %v793 = vld [vmem:[%s289] ss:$2 sm:$0xff]
        %v794 = vpack.c.bf16 %v793, %v793
        %v795 = vld [vmem:[%s5] sm:$0xf]
        %v796 = vld [vmem:[%s5 + $0x4] sm:$0xf]
        %v797 = vld [vmem:[%s5 + $0x8] sm:$0xf]
        %v798 = vld [vmem:[%s5 + $0xc] sm:$0xf]
        %v799 = vld [vmem:[%s5 + $0x10] sm:$0xf]
        %v800 = vld [vmem:[%s5 + $0x14] sm:$0xf]
        %v801 = vld [vmem:[%s5 + $0x18] sm:$0xf]
        %v802 = vld [vmem:[%s5 + $0x1c] sm:$0xf]
        %v803 = vld [vmem:[%s5 + $0x20] sm:$0xf]
        %v813 = vunpack.c.l.b16 %v795
        %v814 = vunpack.c.l.b16 %v796
        %v815 = vunpack.c.l.b16 %v797
        %v816 = vunpack.c.l.b16 %v798
        %v817 = vunpack.c.l.b16 %v799
        %v818 = vunpack.c.l.b16 %v800
        %v819 = vunpack.c.l.b16 %v801
        %v820 = vunpack.c.l.b16 %v802
        %v821 = vunpack.c.l.b16 %v803
        %v822 = vpack.c.b16 %v814, %v813
        %v823 = vpack.c.b16 %v816, %v815
        %v824 = vpack.c.b16 %v818, %v817
        %v825 = vpack.c.b16 %v820, %v819
        %v826 = vpack.c.b16 %v821, %v821
        %v832 = vsel %vm329, %v794, 0
        %v835 = vsel %vm333, %v826, 0
        %837 = vmatprep.subr.bf16.mxu0 0
        %838 = vmatpush1.bf16.msra.mxu0 %v822
        %839 = vmatprep.subr.bf16.mxu0 0
        %840 = vmatpush1.bf16.msra.mxu0 %v823
        %841 = vmatprep.subr.bf16.mxu0 0
        %842 = vmatpush1.bf16.msra.mxu0 %v824
        %843 = vmatprep.subr.bf16.mxu0 0
        %844 = vmatpush1.bf16.msra.mxu0 %v825
        %845 = vmatprep.subr.bf16.mxu0 0
        %846 = vmatpush1.bf16.msra.mxu0 %v835
        %847 = vmatprep.subr.bf16.mxu0 0
        %848 = vmatpush1.bf16.msra.mxu0 0
        %849 = vmatprep.subr.bf16.mxu0 0
        %850 = vmatpush1.bf16.msra.mxu0 0
        %851 = vmatprep.subr.bf16.mxu0 0
        %852 = vmatpush1.bf16.msra.mxu0 0
        %853 = vmatprep.subr.bf16.mxu0 0
        %854 = vmatpush1.bf16.msra.mxu0 0
        %855 = vmatprep.subr.bf16.mxu0 0
        %856 = vmatpush1.bf16.msra.mxu0 0
        %857 = vmatprep.subr.bf16.mxu0 0
        %858 = vmatpush1.bf16.msra.mxu0 0
        %859 = vmatprep.subr.bf16.mxu0 0
        %860 = vmatpush1.bf16.msra.mxu0 0
        %861 = vmatprep.subr.bf16.mxu0 0
        %862 = vmatpush1.bf16.msra.mxu0 0
        %863 = vmatprep.subr.bf16.mxu0 0
        %864 = vmatpush1.bf16.msra.mxu0 0
        %865 = vmatprep.subr.bf16.mxu0 0
        %866 = vmatpush1.bf16.msra.mxu0 0
        %867 = vmatprep.subr.bf16.mxu0 0
        %868 = vmatpush1.bf16.msra.mxu0 0
        %869 = vmatprep.mubr.bf16.mxu0 0
        %870 = vmatmul.mubr.bf16.gmra.mrb[0].mxu0 %v832
        %v871 = vpop.f32.mrb[0].mxu0
        %v872 = vadd.f32 0.0, %v871
        %v873 = vpop.f32.mrb[0].mxu0
        %v874 = vpop.f32.mrb[0].mxu0
        %v875 = vpop.f32.mrb[0].mxu0
        %876 = vdwg.mxu0
        %v877 = vadd.f32 %v792, %v872
        %v878 = vld [vmem:[%s6] sm:$0x1]
        %v880 = vlaneseq
        %v881 = vshrl.u32 %v880, 7
        %v882 = vsub.s32 0, %v881
        %v883 = vrot.slane %v878, %v882
        %v885 = vadd.f32 %v877, %v883
        %v886 = vmax.f32 %v885, 0.0
        %887 = vst.msk [vmem:[%s271] sm:$0xff] %vm546, %v886
        %s888 = sand.u32 %s181, 1
        %s889 = scalar_lea.sflag [#allocation4], %s888
        %s890 = sand.u32 %s181, 1
        %s891 = smul.addr %s890, 8
        %s892 = scalar_lea.vmem [#allocation3], %s891
        // Predicated region
        $region49: #{tpu_custom_call.1} parent=47 // pred_check
          %p893 = pneg %p191
        $region50: #{tpu_custom_call.1} parent=47 // pred_check_branch
          %895 = sbr.rel (%p893) target = $region52
        $region51: #{tpu_custom_call.1} parent=47 // pred_region
          %s897 = ssub.s32 128, 128
          %898 = vsyncadd %s889, %s897
          %s899 = smul.addr %s21, 128
          %s900 = scalar_lea.hbm %s7, %s899
          %s902 = sshll.u32 %s892, 4
          %s903 = int_to_ptr.vmem [resolvable:$true] %s902
          %905 = dma.vmem_to_hbm [thread:$0]  %s903, 128, %s900, %s889
        $region52: #{tpu_custom_call.1} parent=47 // pred_fallthru
          _
      $region48: #{tpu_custom_call.1} parent=5 // pred_fallthru
        _
      %p906 = scmp.le.s32.totalorder 2, %s16
      // Predicated region
      $region53: #{tpu_custom_call.1} parent=5 // pred_check
        %p907 = pneg %p906
      $region54: #{tpu_custom_call.1} parent=5 // pred_check_branch
        %909 = sbr.rel (%p907) target = $region56
      $region55: #{tpu_custom_call.1} parent=5 // pred_region
        %s910 = ssub.s32 %s16, 2
        // Predicated region
        $region57: #{tpu_custom_call.1} parent=55 // pred_check
          %p911 = pneg %p197
        $region58: #{tpu_custom_call.1} parent=55 // pred_check_branch
          %913 = sbr.rel (%p911) target = $region60
        $region59: #{tpu_custom_call.1} parent=55 // pred_region
          %s914 = sand.u32 %s182, 1
          %s915 = scalar_lea.sflag [#allocation4], %s914
          %s916 = sand.u32 %s182, 1
          %s917 = smul.addr %s916, 8
          %s918 = scalar_lea.vmem [#allocation3], %s917
          %919 = dma.done %s915, 128
        $region60: #{tpu_custom_call.1} parent=55 // pred_fallthru
          _
      $region56: #{tpu_custom_call.1} parent=5 // pred_fallthru
        _
    $region6: #{tpu_custom_call.1} parent=1 // loop_footer
      %s20 = sadd.s32 1, %s16
    $region7: #{tpu_custom_call.1} parent=1 // loop_footer_branch
      %15 = sbr.rel target = $region3
    $region8: #{tpu_custom_call.1} parent=1 // loop_exit
      _
    %920 = vsyncpa [#allocation4], 1
    %s921 = scalar_lea.sflag [#allocation4], 1
    %922 = vsyncpa %s921, 1

</llo_original>
